<compile_context>
chip_gen: v7x
topology: tpu7x:2x2x1
jax: 0.10.0
libtpu: 0.0.40
codegen_flags: <defaults>
</compile_context>

<pallas_src>
from functools import partial

import jax
import jax.numpy as jnp
from jax.experimental import pallas as pl
from jax.experimental.pallas import tpu as pltpu


# ----------------------------- Fused kernel ---------------------------------
def fused_kernel(x_ref, w_ref, bconv_ref, sw_ref, fcw_ref, fcb_ref, o_ref,
                 *, ks, r_num, r_len, bt):
    # x_ref   : (Bt*T, wd)      embedded reviews for Bt batch rows, T=r_num*r_len
    # w_ref   : (ks*wd, F)      conv weight in im2col layout
    # bconv_ref: (1, F)         conv bias
    # sw_ref  : (Bt*r_num, 1)   pol * r_num * subj weights (from wrapper)
    # fcw_ref : (F, E), fcb_ref: (1, E)
    # o_ref   : (Bt, E)         relu(fc(r_fea))
    F = bconv_ref.shape[-1]
    wd = x_ref.shape[-1]
    L = r_len - ks + 1

    x = x_ref[...]                                            # (Bt*T, wd)

    # im2col: row t of lhs = [x[t], x[t+1], ..., x[t+ks-1]] (lane concat).
    # Rows whose conv window crosses a review/batch boundary pick up garbage /
    # zero rows here, but the valid-window pooling below NEVER reads them, so
    # no boundary mask is needed.
    cols = [x]
    for k in range(1, ks):                                    # tiny static loop
        cols.append(jnp.concatenate(
            [x[k:, :], jnp.zeros((k, wd), jnp.float32)], axis=0))
    lhs = jnp.concatenate(cols, axis=1)                       # (Bt*T, ks*wd)

    # Single MXU matmul: M = Bt*T, K = ks*wd, lane-aligned N = F.
    acc = jnp.dot(lhs, w_ref[...], preferred_element_type=jnp.float32)
    acc = jnp.maximum(acc + bconv_ref[...], 0.0)              # bias + ReLU

    # Per-review max over the L valid window positions only (vectorized).
    # NOTE: the [:, :L, :] slice is a correctness requirement — it is what
    # excludes boundary-crossing windows now that the mask is gone.
    fea = jnp.max(acc.reshape(bt * r_num, r_len, F)[:, :L, :], axis=1)

    # Sentiment-weighted sum over reviews: lane-broadcast multiply + sublane
    # sum (VPU/XLU) instead of a tiny M=1, K=r_num MXU dot.
    r_fea = jnp.sum((fea * sw_ref[...]).reshape(bt, r_num, F), axis=1)  # (Bt, F)

    # Batched fc + ReLU.  Dropout is identity at inference.
    fc = jnp.dot(r_fea, fcw_ref[...], preferred_element_type=jnp.float32)
    o_ref[...] = jnp.maximum(fc + fcb_ref[...], 0.0)          # one (Bt, E) store


def fused_forward(emb2d, w_im2col, b_conv, sw_col, fc_w_t, fc_b,
                  *, ks, r_num, r_len, bt):
    NT, wd = emb2d.shape
    T = r_num * r_len
    bs = NT // T
    F = b_conv.shape[-1]
    E = fc_w_t.shape[-1]
    assert bs % bt == 0
    grid = (bs // bt,)

    kernel = partial(fused_kernel, ks=ks, r_num=r_num, r_len=r_len, bt=bt)
    return pl.pallas_call(
        kernel,
        out_shape=jax.ShapeDtypeStruct((bs, E), jnp.float32),
        grid=grid,
        in_specs=[
            pl.BlockSpec((bt * T, wd), lambda g: (g, 0)),
            pl.BlockSpec((ks * wd, F), lambda g: (0, 0)),
            pl.BlockSpec((1, F), lambda g: (0, 0)),
            pl.BlockSpec((bt * r_num, 1), lambda g: (g, 0)),
            pl.BlockSpec((F, E), lambda g: (0, 0)),
            pl.BlockSpec((1, E), lambda g: (0, 0)),
        ],
        out_specs=pl.BlockSpec((bt, E), lambda g: (g, 0)),
        compiler_params=pltpu.CompilerParams(dimension_semantics=("parallel",)),
    )(emb2d, w_im2col, b_conv, sw_col, fc_w_t, fc_b)


# ----------------------------- Full forward ----------------------------------
def net_forward(reviews, ids, sentiments, params, ks):
    word_tbl, id_tbl, conv_w, conv_b, fc_w_t, fc_b = params
    bs, r_num, r_len = reviews.shape
    wd = word_tbl.shape[1]
    F = conv_b.shape[-1]

    # Embedding gathers (plain-JAX glue).
    # TODO(synk): at production r_len/word_dim, fold the word-embedding gather
    # into the kernel via PrefetchScalarGridSpec row-gather so the (bs*T, wd)
    # emb slab never round-trips HBM.
    emb = jnp.take(word_tbl, reviews.reshape(-1), axis=0)            # (bs*T, wd)
    id_emb = jnp.take(id_tbl, ids, axis=0)                           # (bs, E)

    # Sentiment softmax weights: O(bs*r_num) scalars -> compute in wrapper,
    # feed as a (bs*r_num, 1) column for lane-broadcast inside the kernel.
    pol = jax.nn.softmax(sentiments[:, :, 0] / 10000.0, axis=1)      # (bs, r_num)
    subj = jax.nn.softmax(sentiments[:, :, 1] / 10000.0, axis=1)     # (bs, r_num)
    sw_col = (pol * float(r_num) * subj).astype(jnp.float32).reshape(bs * r_num, 1)

    # Conv weight (ks, wd, F) -> im2col layout (ks*wd, F).
    w_im2col = conv_w.reshape(ks * wd, F)

    # Whole batch in one grid step at these sizes (bs*T = 128 MXU rows).
    # TODO(synk): on v7x at production bs, pick bt ~ bs/2 (multiple of 8) so
    # the "parallel" grid has >=2 steps and both TensorCores get work; size
    # bt*T*wd against the 64 MiB VMEM there.
    bt = bs
    fc_out = fused_forward(emb, w_im2col, conv_b, sw_col, fc_w_t, fc_b,
                           ks=ks, r_num=r_num, r_len=r_len, bt=bt)   # (bs, E)

    # relu(id_emb) + stack are pure layout: keep them in XLA.
    return jnp.stack([jax.nn.relu(id_emb), fc_out], axis=1)          # (bs, 2, E)


# ----------------------------- Pure-JAX reference -----------------------------
def reference_forward(reviews, ids, sentiments, params, ks):
    word_tbl, id_tbl, conv_w, conv_b, fc_w_t, fc_b = params
    bs, r_num, r_len = reviews.shape
    wd = word_tbl.shape[1]
    emb = word_tbl[reviews].reshape(bs * r_num, r_len, wd)
    L = r_len - ks + 1
    conv = sum(
        jnp.einsum("nld,df->nlf", emb[:, k:k + L, :], conv_w[k]) for k in range(ks)
    ) + conv_b[0][None, None, :]
    conv = jax.nn.relu(conv)
    fea = conv.max(axis=1).reshape(bs, r_num, -1)
    id_emb = id_tbl[ids]
    pol = jax.nn.softmax(sentiments[:, :, 0:1] / 10000.0, axis=1)
    subj = jax.nn.softmax(sentiments[:, :, 1:2] / 10000.0, axis=1)
    r_fea = (fea * pol * r_num * subj).sum(axis=1)
    fc = jax.nn.relu(r_fea @ fc_w_t + fc_b[0])
    return jnp.stack([jax.nn.relu(id_emb), fc], axis=1)


# ----------------------------- Main -------------------------------------------
if __name__ == "__main__":
    # "opt" hyper-parameters (small, consistent with the module)
    vocab_size = 100
    word_dim = 32
    kernel_size = 3
    filters_num = 64
    id_emb_size = 32
    user_num = 50
    bs, r_num, r_len = 2, 4, 16

    key = jax.random.PRNGKey(0)
    k = jax.random.split(key, 8)

    # deterministic parameter init (mirrors reset_para shapes/intent)
    word_tbl = jax.random.normal(k[0], (vocab_size, word_dim), jnp.float32) * (
        (2.0 / (vocab_size + word_dim)) ** 0.5)                       # xavier-ish
    id_tbl = jax.random.normal(k[1], (user_num, id_emb_size), jnp.float32) * (
        (2.0 / (user_num + id_emb_size)) ** 0.5)
    # torch conv weight (F, 1, ks, wd) -> per-tap layout (ks, wd, F)
    conv_w_torch = jax.random.normal(
        k[2], (filters_num, 1, kernel_size, word_dim), jnp.float32) * 0.1
    conv_w = jnp.transpose(conv_w_torch[:, 0], (1, 2, 0))             # (ks, wd, F)
    conv_b = jnp.full((1, filters_num), 0.1, jnp.float32)
    # torch fc weight (E, F) -> pre-transposed (F, E)
    fc_w_torch = jax.random.uniform(
        k[3], (id_emb_size, filters_num), jnp.float32, -0.1, 0.1)
    fc_w_t = fc_w_torch.T                                             # (F, E)
    fc_b = jnp.full((1, id_emb_size), 0.1, jnp.float32)

    params = (word_tbl, id_tbl, conv_w, conv_b, fc_w_t, fc_b)

    # inputs
    reviews = jax.random.randint(k[4], (bs, r_num, r_len), 0, vocab_size, jnp.int32)
    ids = jax.random.randint(k[5], (bs,), 0, user_num, jnp.int32)
    ids_list = jax.random.randint(k[6], (bs, r_num), 0, user_num, jnp.int32)  # unused in forward
    sentiments = jax.random.normal(k[7], (bs, r_num, 3), jnp.float32) * 5000.0

    fwd = jax.jit(net_forward, static_argnums=(4,))
    out = fwd(reviews, ids, sentiments, params, kernel_size)
    out = jax.block_until_ready(out)

    ref = reference_forward(reviews, ids, sentiments, params, kernel_size)
    assert out.shape == (bs, 2, id_emb_size), out.shape
    assert jnp.allclose(out, ref, rtol=1e-4, atol=1e-4), (
        float(jnp.max(jnp.abs(out - ref))))

    print("KERNEL_OK")
</pallas_src>

<mosaic_0001>
module attributes {stable_mosaic.version = 11 : i64} {
  func.func @fused_kernel(%arg0: i32, %arg1: memref<128x32xf32, #tpu.memory_space<vmem>>, %arg2: memref<96x64xf32, #tpu.memory_space<vmem>>, %arg3: memref<1x64xf32, #tpu.memory_space<vmem>>, %arg4: memref<8x1xf32, #tpu.memory_space<vmem>>, %arg5: memref<64x32xf32, #tpu.memory_space<vmem>>, %arg6: memref<1x32xf32, #tpu.memory_space<vmem>>, %arg7: memref<2x32xf32, #tpu.memory_space<vmem>>) attributes {dimension_semantics = [#tpu.dimension_semantics<parallel>], iteration_bounds = array<i64: 1>, scalar_prefetch = 0 : i64, scratch_operands = 0 : i64, tpu.core_type = #tpu.core_type<tc>, window_params = [{transform_indices = @transform_0, window_bounds = array<i64: 128, 32>}, {pipeline_mode = #tpu.pipeline_mode<synchronous>, transform_indices = @transform_1, window_bounds = array<i64: 96, 64>}, {pipeline_mode = #tpu.pipeline_mode<synchronous>, transform_indices = @transform_2, window_bounds = array<i64: 1, 64>}, {transform_indices = @transform_3, window_bounds = array<i64: 8, 1>}, {pipeline_mode = #tpu.pipeline_mode<synchronous>, transform_indices = @transform_4, window_bounds = array<i64: 64, 32>}, {pipeline_mode = #tpu.pipeline_mode<synchronous>, transform_indices = @transform_5, window_bounds = array<i64: 1, 32>}, {transform_indices = @transform_6, window_bounds = array<i64: 2, 32>}]} {
    %c0 = arith.constant 0 : index
    %c0_0 = arith.constant 0 : index
    %0 = vector.load %arg1[%c0, %c0_0] : memref<128x32xf32, #tpu.memory_space<vmem>>, vector<128x32xf32>
    %1 = vector.extract_strided_slice %0 {offsets = [1, 0], sizes = [127, 32], strides = [1, 1]} : vector<128x32xf32> to vector<127x32xf32>
    %cst = arith.constant 0.000000e+00 : f32
    %2 = vector.broadcast %cst : f32 to vector<1x32xf32>
    %3 = tpu.concatenate %1, %2 in 0 : vector<127x32xf32>, vector<1x32xf32> -> vector<128x32xf32>
    %4 = vector.extract_strided_slice %0 {offsets = [2, 0], sizes = [126, 32], strides = [1, 1]} : vector<128x32xf32> to vector<126x32xf32>
    %cst_1 = arith.constant 0.000000e+00 : f32
    %5 = vector.broadcast %cst_1 : f32 to vector<2x32xf32>
    %6 = tpu.concatenate %4, %5 in 0 : vector<126x32xf32>, vector<2x32xf32> -> vector<128x32xf32>
    %7 = tpu.concatenate %0, %3, %6 in 1 : vector<128x32xf32>, vector<128x32xf32>, vector<128x32xf32> -> vector<128x96xf32>
    %c0_2 = arith.constant 0 : index
    %c0_3 = arith.constant 0 : index
    %8 = vector.load %arg2[%c0_2, %c0_3] : memref<96x64xf32, #tpu.memory_space<vmem>>, vector<96x64xf32>
    %cst_4 = arith.constant dense<0.000000e+00> : vector<128x64xf32>
    %9 = tpu.matmul %7, %8, %cst_4 {dimension_numbers = #tpu.dot_dimension_numbers<[1], [0], [0], [1], [0, 0, 1, 1], [], []>} : vector<128x96xf32>, vector<96x64xf32>, vector<128x64xf32> -> vector<128x64xf32>
    %c0_5 = arith.constant 0 : index
    %c0_6 = arith.constant 0 : index
    %10 = vector.load %arg3[%c0_5, %c0_6] : memref<1x64xf32, #tpu.memory_space<vmem>>, vector<1x64xf32>
    %11 = vector.broadcast %10 : vector<1x64xf32> to vector<128x64xf32>
    %12 = arith.addf %9, %11 : vector<128x64xf32>
    %cst_7 = arith.constant 0.000000e+00 : f32
    %13 = vector.broadcast %cst_7 : f32 to vector<128x64xf32>
    %14 = arith.maximumf %12, %13 : vector<128x64xf32>
    %15 = vector.shape_cast %14 : vector<128x64xf32> to vector<8x16x64xf32>
    %16 = vector.extract_strided_slice %15 {offsets = [0, 0, 0], sizes = [8, 14, 64], strides = [1, 1, 1]} : vector<8x16x64xf32> to vector<8x14x64xf32>
    %cst_8 = arith.constant dense<0xFF800000> : vector<8x64xf32>
    %17 = vector.multi_reduction <maximumf>, %16, %cst_8 [1] : vector<8x14x64xf32> to vector<8x64xf32>
    %c0_9 = arith.constant 0 : index
    %c0_10 = arith.constant 0 : index
    %18 = vector.load %arg4[%c0_9, %c0_10] : memref<8x1xf32, #tpu.memory_space<vmem>>, vector<8x1xf32>
    %19 = vector.broadcast %18 : vector<8x1xf32> to vector<8x64xf32>
    %20 = arith.mulf %17, %19 : vector<8x64xf32>
    %21 = vector.shape_cast %20 : vector<8x64xf32> to vector<2x4x64xf32>
    %cst_11 = arith.constant dense<0.000000e+00> : vector<2x64xf32>
    %22 = vector.multi_reduction <add>, %21, %cst_11 [1] : vector<2x4x64xf32> to vector<2x64xf32>
    %c0_12 = arith.constant 0 : index
    %c0_13 = arith.constant 0 : index
    %23 = vector.load %arg5[%c0_12, %c0_13] : memref<64x32xf32, #tpu.memory_space<vmem>>, vector<64x32xf32>
    %cst_14 = arith.constant dense<0.000000e+00> : vector<2x32xf32>
    %24 = tpu.matmul %22, %23, %cst_14 {dimension_numbers = #tpu.dot_dimension_numbers<[1], [0], [0], [1], [0, 0, 1, 1], [], []>} : vector<2x64xf32>, vector<64x32xf32>, vector<2x32xf32> -> vector<2x32xf32>
    %c0_15 = arith.constant 0 : index
    %c0_16 = arith.constant 0 : index
    %25 = vector.load %arg6[%c0_15, %c0_16] : memref<1x32xf32, #tpu.memory_space<vmem>>, vector<1x32xf32>
    %26 = vector.broadcast %25 : vector<1x32xf32> to vector<2x32xf32>
    %27 = arith.addf %24, %26 : vector<2x32xf32>
    %cst_17 = arith.constant 0.000000e+00 : f32
    %28 = vector.broadcast %cst_17 : f32 to vector<2x32xf32>
    %29 = arith.maximumf %27, %28 : vector<2x32xf32>
    %c0_18 = arith.constant 0 : index
    %c0_19 = arith.constant 0 : index
    %30 = vector.load %arg7[%c0_18, %c0_19] : memref<2x32xf32, #tpu.memory_space<vmem>>, vector<2x32xf32>
    tpu.vector_store %arg7[%c0_18, %c0_19], %29 {strides = array<i32>} : memref<2x32xf32, #tpu.memory_space<vmem>>, vector<2x32xf32>,
    return
  }
  func.func @transform_0(%arg0: i32) -> (i32, i32) {
    %c0_i32 = arith.constant 0 : i32
    %c0_i32_0 = arith.constant 0 : i32
    return %arg0, %c0_i32 : i32, i32
  }
  func.func @transform_1(%arg0: i32) -> (i32, i32) {
    %c0_i32 = arith.constant 0 : i32
    %c0_i32_0 = arith.constant 0 : i32
    %c0_i32_1 = arith.constant 0 : i32
    return %c0_i32, %c0_i32_0 : i32, i32
  }
  func.func @transform_2(%arg0: i32) -> (i32, i32) {
    %c0_i32 = arith.constant 0 : i32
    %c0_i32_0 = arith.constant 0 : i32
    %c0_i32_1 = arith.constant 0 : i32
    return %c0_i32, %c0_i32_0 : i32, i32
  }
  func.func @transform_3(%arg0: i32) -> (i32, i32) {
    %c0_i32 = arith.constant 0 : i32
    %c0_i32_0 = arith.constant 0 : i32
    return %arg0, %c0_i32 : i32, i32
  }
  func.func @transform_4(%arg0: i32) -> (i32, i32) {
    %c0_i32 = arith.constant 0 : i32
    %c0_i32_0 = arith.constant 0 : i32
    %c0_i32_1 = arith.constant 0 : i32
    return %c0_i32, %c0_i32_0 : i32, i32
  }
  func.func @transform_5(%arg0: i32) -> (i32, i32) {
    %c0_i32 = arith.constant 0 : i32
    %c0_i32_0 = arith.constant 0 : i32
    %c0_i32_1 = arith.constant 0 : i32
    return %c0_i32, %c0_i32_0 : i32, i32
  }
  func.func @transform_6(%arg0: i32) -> (i32, i32) {
    %c0_i32 = arith.constant 0 : i32
    %c0_i32_0 = arith.constant 0 : i32
    return %arg0, %c0_i32 : i32, i32
  }
}

</mosaic_0001>

<llo_original>
// kernel: net_forward.1
$region0: #{net_forward.1}
  #allocation0 [shape = 'u32[]', space=smem, size = 0x4, offset = 0x4, fixed_abs, tag = 'smem constant byte address 0x4 - core index']
  #allocation1 [shape = 'u32[144,128]{1,0:T(1,128)}', space=vmem, size = 0x12000, scoped, tag = 'internal scratch']
  %s0 = inlined_call_operand.vmem [shape: f32[128,32], index: 0, kind: input, shape index: {}]
  %s1 = inlined_call_operand.vmem [shape: f32[96,64], index: 1, kind: input, shape index: {}]
  %s2 = inlined_call_operand.vmem [shape: f32[1,64], index: 2, kind: input, shape index: {}]
  %s3 = inlined_call_operand.vmem [shape: f32[8,1], index: 3, kind: input, shape index: {}]
  %s4 = inlined_call_operand.vmem [shape: f32[64,32], index: 4, kind: input, shape index: {}]
  %s5 = inlined_call_operand.vmem [shape: f32[1,32], index: 5, kind: input, shape index: {}]
  %s6 = inlined_call_operand.vmem [shape: f32[2,32], index: 6, kind: output, shape index: {}]
  %s7 = sld [smem:[#allocation0]]
  $region34: #{net_forward.1} parent=0
    _
  %s9 = ssub.s32 1, %s7
  %s10 = scalar_select 0, %s9, %s7
  // Predicated region
  $region2: #{net_forward.1} parent=0 // pred_check
    _
  $region3: #{net_forward.1} parent=0 // pred_check_branch
    %12 = sbr.rel (0) target = $region5
  $region4: #{net_forward.1} parent=0 // pred_region
    _
  $region5: #{net_forward.1} parent=0 // pred_fallthru
    _
  // Predicated region
  $region6: #{net_forward.1} parent=0 // pred_check
    _
  $region7: #{net_forward.1} parent=0 // pred_check_branch
    %14 = sbr.rel (0) target = $region9
  $region8: #{net_forward.1} parent=0 // pred_region
    _
  $region9: #{net_forward.1} parent=0 // pred_fallthru
    _
  // Predicated region
  $region10: #{net_forward.1} parent=0 // pred_check
    _
  $region11: #{net_forward.1} parent=0 // pred_check_branch
    %16 = sbr.rel (0) target = $region13
  $region12: #{net_forward.1} parent=0 // pred_region
    _
  $region13: #{net_forward.1} parent=0 // pred_fallthru
    _
  // Predicated region
  $region14: #{net_forward.1} parent=0 // pred_check
    _
  $region15: #{net_forward.1} parent=0 // pred_check_branch
    %18 = sbr.rel (0) target = $region17
  $region16: #{net_forward.1} parent=0 // pred_region
    _
  $region17: #{net_forward.1} parent=0 // pred_fallthru
    _
  // Predicated region
  $region18: #{net_forward.1} parent=0 // pred_check
    _
  $region19: #{net_forward.1} parent=0 // pred_check_branch
    %20 = sbr.rel (0) target = $region21
  $region20: #{net_forward.1} parent=0 // pred_region
    _
  $region21: #{net_forward.1} parent=0 // pred_fallthru
    _
  // Predicated region
  $region22: #{net_forward.1} parent=0 // pred_check
    _
  $region23: #{net_forward.1} parent=0 // pred_check_branch
    %22 = sbr.rel (0) target = $region25
  $region24: #{net_forward.1} parent=0 // pred_region
    _
  $region25: #{net_forward.1} parent=0 // pred_fallthru
    _
  %v23 = vld [vmem:[%s0] sm:$0xff]
  %v24 = vld [vmem:[%s0 + $0x8] sm:$0xff]
  %v25 = vld [vmem:[%s0 + $0x10] sm:$0xff]
  %v26 = vld [vmem:[%s0 + $0x18] sm:$0xff]
  %v27 = vld [vmem:[%s0 + $0x20] sm:$0xff]
  %v28 = vld [vmem:[%s0 + $0x28] sm:$0xff]
  %v29 = vld [vmem:[%s0 + $0x30] sm:$0xff]
  %v30 = vld [vmem:[%s0 + $0x38] sm:$0xff]
  %v31 = vld [vmem:[%s0 + $0x40] sm:$0xff]
  %v32 = vld [vmem:[%s0 + $0x48] sm:$0xff]
  %v33 = vld [vmem:[%s0 + $0x50] sm:$0xff]
  %v34 = vld [vmem:[%s0 + $0x58] sm:$0xff]
  %v35 = vld [vmem:[%s0 + $0x60] sm:$0xff]
  %v36 = vld [vmem:[%s0 + $0x68] sm:$0xff]
  %v37 = vld [vmem:[%s0 + $0x70] sm:$0xff]
  %v38 = vld [vmem:[%s0 + $0x78] sm:$0xff]
  %vm55 = vcmask 1046528
  %v56 = vrot.slane %v23, 1
  %v57 = vrot.slane %v24, 1
  %v58 = vsel %vm55, %v56, %v57
  %v59 = vrot.slane %v25, 1
  %v60 = vsel %vm55, %v57, %v59
  %v61 = vrot.slane %v26, 1
  %v62 = vsel %vm55, %v59, %v61
  %v63 = vrot.slane %v27, 1
  %v64 = vsel %vm55, %v61, %v63
  %v65 = vrot.slane %v28, 1
  %v66 = vsel %vm55, %v63, %v65
  %v67 = vrot.slane %v29, 1
  %v68 = vsel %vm55, %v65, %v67
  %v69 = vrot.slane %v30, 1
  %v70 = vsel %vm55, %v67, %v69
  %v71 = vrot.slane %v31, 1
  %v72 = vsel %vm55, %v69, %v71
  %v73 = vrot.slane %v32, 1
  %v74 = vsel %vm55, %v71, %v73
  %v75 = vrot.slane %v33, 1
  %v76 = vsel %vm55, %v73, %v75
  %v77 = vrot.slane %v34, 1
  %v78 = vsel %vm55, %v75, %v77
  %v79 = vrot.slane %v35, 1
  %v80 = vsel %vm55, %v77, %v79
  %v81 = vrot.slane %v36, 1
  %v82 = vsel %vm55, %v79, %v81
  %v83 = vrot.slane %v37, 1
  %v84 = vsel %vm55, %v81, %v83
  %v85 = vrot.slane %v38, 1
  %v86 = vsel %vm55, %v83, %v85
  %v88 = vsel %vm55, %v85, 0.0
  %vm89 = vcmask 1045504
  %v90 = vrot.slane %v23, 2
  %v91 = vrot.slane %v24, 2
  %v92 = vsel %vm89, %v90, %v91
  %v93 = vrot.slane %v25, 2
  %v94 = vsel %vm89, %v91, %v93
  %v95 = vrot.slane %v26, 2
  %v96 = vsel %vm89, %v93, %v95
  %v97 = vrot.slane %v27, 2
  %v98 = vsel %vm89, %v95, %v97
  %v99 = vrot.slane %v28, 2
  %v100 = vsel %vm89, %v97, %v99
  %v101 = vrot.slane %v29, 2
  %v102 = vsel %vm89, %v99, %v101
  %v103 = vrot.slane %v30, 2
  %v104 = vsel %vm89, %v101, %v103
  %v105 = vrot.slane %v31, 2
  %v106 = vsel %vm89, %v103, %v105
  %v107 = vrot.slane %v32, 2
  %v108 = vsel %vm89, %v105, %v107
  %v109 = vrot.slane %v33, 2
  %v110 = vsel %vm89, %v107, %v109
  %v111 = vrot.slane %v34, 2
  %v112 = vsel %vm89, %v109, %v111
  %v113 = vrot.slane %v35, 2
  %v114 = vsel %vm89, %v111, %v113
  %v115 = vrot.slane %v36, 2
  %v116 = vsel %vm89, %v113, %v115
  %v117 = vrot.slane %v37, 2
  %v118 = vsel %vm89, %v115, %v117
  %v119 = vrot.slane %v38, 2
  %v120 = vsel %vm89, %v117, %v119
  %v122 = vsel %vm89, %v119, 0.0
  %124 = vrot.lane.b32.xlu0 %v58, 32
  %v125 = vpop.permute.xlu0 %124
  %126 = vrot.lane.b32.xlu0 %v60, 32
  %v127 = vpop.permute.xlu0 %126
  %128 = vrot.lane.b32.xlu0 %v62, 32
  %v129 = vpop.permute.xlu0 %128
  %130 = vrot.lane.b32.xlu0 %v64, 32
  %v131 = vpop.permute.xlu0 %130
  %132 = vrot.lane.b32.xlu0 %v66, 32
  %v133 = vpop.permute.xlu0 %132
  %134 = vrot.lane.b32.xlu0 %v68, 32
  %v135 = vpop.permute.xlu0 %134
  %136 = vrot.lane.b32.xlu0 %v70, 32
  %v137 = vpop.permute.xlu0 %136
  %138 = vrot.lane.b32.xlu0 %v72, 32
  %v139 = vpop.permute.xlu0 %138
  %140 = vrot.lane.b32.xlu0 %v74, 32
  %v141 = vpop.permute.xlu0 %140
  %142 = vrot.lane.b32.xlu0 %v76, 32
  %v143 = vpop.permute.xlu0 %142
  %144 = vrot.lane.b32.xlu0 %v78, 32
  %v145 = vpop.permute.xlu0 %144
  %146 = vrot.lane.b32.xlu0 %v80, 32
  %v147 = vpop.permute.xlu0 %146
  %148 = vrot.lane.b32.xlu0 %v82, 32
  %v149 = vpop.permute.xlu0 %148
  %150 = vrot.lane.b32.xlu0 %v84, 32
  %v151 = vpop.permute.xlu0 %150
  %152 = vrot.lane.b32.xlu0 %v86, 32
  %v153 = vpop.permute.xlu0 %152
  %154 = vrot.lane.b32.xlu0 %v88, 32
  %v155 = vpop.permute.xlu0 %154
  %173 = vrot.lane.b32.xlu0 %v92, 64
  %v174 = vpop.permute.xlu0 %173
  %175 = vrot.lane.b32.xlu0 %v94, 64
  %v176 = vpop.permute.xlu0 %175
  %177 = vrot.lane.b32.xlu0 %v96, 64
  %v178 = vpop.permute.xlu0 %177
  %179 = vrot.lane.b32.xlu0 %v98, 64
  %v180 = vpop.permute.xlu0 %179
  %181 = vrot.lane.b32.xlu0 %v100, 64
  %v182 = vpop.permute.xlu0 %181
  %183 = vrot.lane.b32.xlu0 %v102, 64
  %v184 = vpop.permute.xlu0 %183
  %185 = vrot.lane.b32.xlu0 %v104, 64
  %v186 = vpop.permute.xlu0 %185
  %187 = vrot.lane.b32.xlu0 %v106, 64
  %v188 = vpop.permute.xlu0 %187
  %189 = vrot.lane.b32.xlu0 %v108, 64
  %v190 = vpop.permute.xlu0 %189
  %191 = vrot.lane.b32.xlu0 %v110, 64
  %v192 = vpop.permute.xlu0 %191
  %193 = vrot.lane.b32.xlu0 %v112, 64
  %v194 = vpop.permute.xlu0 %193
  %195 = vrot.lane.b32.xlu0 %v114, 64
  %v196 = vpop.permute.xlu0 %195
  %197 = vrot.lane.b32.xlu0 %v116, 64
  %v198 = vpop.permute.xlu0 %197
  %199 = vrot.lane.b32.xlu0 %v118, 64
  %v200 = vpop.permute.xlu0 %199
  %201 = vrot.lane.b32.xlu0 %v120, 64
  %v202 = vpop.permute.xlu0 %201
  %203 = vrot.lane.b32.xlu0 %v122, 64
  %v204 = vpop.permute.xlu0 %203
  %vm221 = vcmask 261120
  %v222 = vsel %vm221, %v23, %v125
  %v223 = vsel %vm221, %v24, %v127
  %v224 = vsel %vm221, %v25, %v129
  %v225 = vsel %vm221, %v26, %v131
  %v226 = vsel %vm221, %v27, %v133
  %v227 = vsel %vm221, %v28, %v135
  %v228 = vsel %vm221, %v29, %v137
  %v229 = vsel %vm221, %v30, %v139
  %v230 = vsel %vm221, %v31, %v141
  %v231 = vsel %vm221, %v32, %v143
  %v232 = vsel %vm221, %v33, %v145
  %v233 = vsel %vm221, %v34, %v147
  %v234 = vsel %vm221, %v35, %v149
  %v235 = vsel %vm221, %v36, %v151
  %v236 = vsel %vm221, %v37, %v153
  %v237 = vsel %vm221, %v38, %v155
  %vm238 = vcmask 523264
  %v239 = vsel %vm238, %v222, %v174
  %v240 = vsel %vm238, %v223, %v176
  %v241 = vsel %vm238, %v224, %v178
  %v242 = vsel %vm238, %v225, %v180
  %v243 = vsel %vm238, %v226, %v182
  %v244 = vsel %vm238, %v227, %v184
  %v245 = vsel %vm238, %v228, %v186
  %v246 = vsel %vm238, %v229, %v188
  %v247 = vsel %vm238, %v230, %v190
  %v248 = vsel %vm238, %v231, %v192
  %v249 = vsel %vm238, %v232, %v194
  %v250 = vsel %vm238, %v233, %v196
  %v251 = vsel %vm238, %v234, %v198
  %v252 = vsel %vm238, %v235, %v200
  %v253 = vsel %vm238, %v236, %v202
  %v254 = vsel %vm238, %v237, %v204
  %v255 = vld [vmem:[%s1] sm:$0xff]
  %v256 = vld [vmem:[%s1 + $0x8] sm:$0xff]
  %v257 = vld [vmem:[%s1 + $0x10] sm:$0xff]
  %v258 = vld [vmem:[%s1 + $0x18] sm:$0xff]
  %v259 = vld [vmem:[%s1 + $0x20] sm:$0xff]
  %v260 = vld [vmem:[%s1 + $0x28] sm:$0xff]
  %v261 = vld [vmem:[%s1 + $0x30] sm:$0xff]
  %v262 = vld [vmem:[%s1 + $0x38] sm:$0xff]
  %v263 = vld [vmem:[%s1 + $0x40] sm:$0xff]
  %v264 = vld [vmem:[%s1 + $0x48] sm:$0xff]
  %v265 = vld [vmem:[%s1 + $0x50] sm:$0xff]
  %v266 = vld [vmem:[%s1 + $0x58] sm:$0xff]
  %v267 = vld [vmem:[%s2] sm:$0x1]
  %v269 = vlaneseq
  %v270 = vshrl.u32 %v269, 7
  %v271 = vsub.s32 0, %v270
  %v272 = vrot.slane %v267, %v271
  %vm274 = vcmask 785408
  %v276 = vsel %vm274, %v239, 0
  %v279 = vsel %vm274, %v240, 0
  %v282 = vsel %vm274, %v241, 0
  %v285 = vsel %vm274, %v242, 0
  %v288 = vsel %vm274, %v243, 0
  %v291 = vsel %vm274, %v244, 0
  %v294 = vsel %vm274, %v245, 0
  %v297 = vsel %vm274, %v246, 0
  %v300 = vsel %vm274, %v247, 0
  %v303 = vsel %vm274, %v248, 0
  %v306 = vsel %vm274, %v249, 0
  %v309 = vsel %vm274, %v250, 0
  %v312 = vsel %vm274, %v251, 0
  %v315 = vsel %vm274, %v252, 0
  %v318 = vsel %vm274, %v253, 0
  %v321 = vsel %vm274, %v254, 0
  %323 = vmatprep.subr.mxu0 0.0
  %324 = vmatpush1.msra.mxu0 %v255
  %325 = vmatprep.subr.mxu0 0.0
  %326 = vmatpush1.msra.mxu0 %v256
  %327 = vmatprep.subr.mxu0 0.0
  %328 = vmatpush1.msra.mxu0 %v257
  %329 = vmatprep.subr.mxu0 0.0
  %330 = vmatpush1.msra.mxu0 %v258
  %331 = vmatprep.subr.mxu0 0.0
  %332 = vmatpush1.msra.mxu0 %v259
  %333 = vmatprep.subr.mxu0 0.0
  %334 = vmatpush1.msra.mxu0 %v260
  %335 = vmatprep.subr.mxu0 0.0
  %336 = vmatpush1.msra.mxu0 %v261
  %337 = vmatprep.subr.mxu0 0.0
  %338 = vmatpush1.msra.mxu0 %v262
  %339 = vmatprep.subr.mxu0 0.0
  %340 = vmatpush1.msra.mxu0 %v263
  %341 = vmatprep.subr.mxu0 0.0
  %342 = vmatpush1.msra.mxu0 %v264
  %343 = vmatprep.subr.mxu0 0.0
  %344 = vmatpush1.msra.mxu0 %v265
  %345 = vmatprep.subr.mxu0 0.0
  %346 = vmatpush1.msra.mxu0 %v266
  %347 = vmatprep.subr.mxu0 0.0
  %348 = vmatpush1.msra.mxu0 0.0
  %349 = vmatprep.subr.mxu0 0.0
  %350 = vmatpush1.msra.mxu0 0.0
  %351 = vmatprep.subr.mxu0 0.0
  %352 = vmatpush1.msra.mxu0 0.0
  %353 = vmatprep.subr.mxu0 0.0
  %354 = vmatpush1.msra.mxu0 0.0
  %355 = vmatprep.subr.mxu0 0.0
  %356 = vmatpush1.msra.mxu0 0.0
  %357 = vmatprep.subr.mxu0 0.0
  %358 = vmatpush1.msra.mxu0 0.0
  %359 = vmatprep.subr.mxu0 0.0
  %360 = vmatpush1.msra.mxu0 0.0
  %361 = vmatprep.subr.mxu0 0.0
  %362 = vmatpush1.msra.mxu0 0.0
  %363 = vmatprep.subr.mxu0 0.0
  %364 = vmatpush1.msra.mxu0 0.0
  %365 = vmatprep.subr.mxu0 0.0
  %366 = vmatpush1.msra.mxu0 0.0
  %367 = vmatprep.subr.mxu0 0.0
  %368 = vmatpush1.msra.mxu0 0.0
  %369 = vmatprep.subr.mxu0 0.0
  %370 = vmatpush1.msra.mxu0 0.0
  %371 = vmatprep.subr.mxu0 0.0
  %372 = vmatpush1.msra.mxu0 0.0
  %373 = vmatprep.subr.mxu0 0.0
  %374 = vmatpush1.msra.mxu0 0.0
  %375 = vmatprep.subr.mxu0 0.0
  %376 = vmatpush1.msra.mxu0 0.0
  %377 = vmatprep.subr.mxu0 0.0
  %378 = vmatpush1.msra.mxu0 0.0
  %379 = vmatprep.subr.mxu0 0.0
  %380 = vmatpush1.msra.mxu0 0.0
  %381 = vmatprep.subr.mxu0 0.0
  %382 = vmatpush1.msra.mxu0 0.0
  %383 = vmatprep.subr.mxu0 0.0
  %384 = vmatpush1.msra.mxu0 0.0
  %385 = vmatprep.subr.mxu0 0.0
  %386 = vmatpush1.msra.mxu0 0.0
  %387 = vmatprep.mubr.f32.mxu0 0.0
  %388 = vmatmul.mubr.f32.gmra.mrb[0].mxu0 %v276
  %v389 = vpop.f32.mrb[0].mxu0
  %v390 = vadd.f32 %v272, %v389
  %v391 = vpop.f32.mrb[0].mxu0
  %392 = vmatprep.mubr.f32.mxu0 0.0
  %393 = vmatmul.mubr.f32.gmra.mrb[0].mxu0 %v279
  %v394 = vpop.f32.mrb[0].mxu0
  %v395 = vadd.f32 %v272, %v394
  %v396 = vpop.f32.mrb[0].mxu0
  %397 = vmatprep.mubr.f32.mxu0 0.0
  %398 = vmatmul.mubr.f32.gmra.mrb[0].mxu0 %v282
  %v399 = vpop.f32.mrb[0].mxu0
  %v400 = vadd.f32 %v272, %v399
  %v401 = vpop.f32.mrb[0].mxu0
  %402 = vmatprep.mubr.f32.mxu0 0.0
  %403 = vmatmul.mubr.f32.gmra.mrb[0].mxu0 %v285
  %v404 = vpop.f32.mrb[0].mxu0
  %v405 = vadd.f32 %v272, %v404
  %v406 = vpop.f32.mrb[0].mxu0
  %407 = vmatprep.mubr.f32.mxu0 0.0
  %408 = vmatmul.mubr.f32.gmra.mrb[0].mxu0 %v288
  %v409 = vpop.f32.mrb[0].mxu0
  %v410 = vadd.f32 %v272, %v409
  %v411 = vpop.f32.mrb[0].mxu0
  %412 = vmatprep.mubr.f32.mxu0 0.0
  %413 = vmatmul.mubr.f32.gmra.mrb[0].mxu0 %v291
  %v414 = vpop.f32.mrb[0].mxu0
  %v415 = vadd.f32 %v272, %v414
  %v416 = vpop.f32.mrb[0].mxu0
  %417 = vmatprep.mubr.f32.mxu0 0.0
  %418 = vmatmul.mubr.f32.gmra.mrb[0].mxu0 %v294
  %v419 = vpop.f32.mrb[0].mxu0
  %v420 = vadd.f32 %v272, %v419
  %v421 = vpop.f32.mrb[0].mxu0
  %422 = vmatprep.mubr.f32.mxu0 0.0
  %423 = vmatmul.mubr.f32.gmra.mrb[0].mxu0 %v297
  %v424 = vpop.f32.mrb[0].mxu0
  %v425 = vadd.f32 %v272, %v424
  %v426 = vpop.f32.mrb[0].mxu0
  %427 = vmatprep.mubr.f32.mxu0 0.0
  %428 = vmatmul.mubr.f32.gmra.mrb[0].mxu0 %v300
  %v429 = vpop.f32.mrb[0].mxu0
  %v430 = vadd.f32 %v272, %v429
  %v431 = vpop.f32.mrb[0].mxu0
  %432 = vmatprep.mubr.f32.mxu0 0.0
  %433 = vmatmul.mubr.f32.gmra.mrb[0].mxu0 %v303
  %v434 = vpop.f32.mrb[0].mxu0
  %v435 = vadd.f32 %v272, %v434
  %v436 = vpop.f32.mrb[0].mxu0
  %437 = vmatprep.mubr.f32.mxu0 0.0
  %438 = vmatmul.mubr.f32.gmra.mrb[0].mxu0 %v306
  %v439 = vpop.f32.mrb[0].mxu0
  %v440 = vadd.f32 %v272, %v439
  %v441 = vpop.f32.mrb[0].mxu0
  %442 = vmatprep.mubr.f32.mxu0 0.0
  %443 = vmatmul.mubr.f32.gmra.mrb[0].mxu0 %v309
  %v444 = vpop.f32.mrb[0].mxu0
  %v445 = vadd.f32 %v272, %v444
  %v446 = vpop.f32.mrb[0].mxu0
  %447 = vmatprep.mubr.f32.mxu0 0.0
  %448 = vmatmul.mubr.f32.gmra.mrb[0].mxu0 %v312
  %v449 = vpop.f32.mrb[0].mxu0
  %v450 = vadd.f32 %v272, %v449
  %v451 = vpop.f32.mrb[0].mxu0
  %452 = vmatprep.mubr.f32.mxu0 0.0
  %453 = vmatmul.mubr.f32.gmra.mrb[0].mxu0 %v315
  %v454 = vpop.f32.mrb[0].mxu0
  %v455 = vadd.f32 %v272, %v454
  %v456 = vpop.f32.mrb[0].mxu0
  %457 = vmatprep.mubr.f32.mxu0 0.0
  %458 = vmatmul.mubr.f32.gmra.mrb[0].mxu0 %v318
  %v459 = vpop.f32.mrb[0].mxu0
  %v460 = vadd.f32 %v272, %v459
  %v461 = vpop.f32.mrb[0].mxu0
  %462 = vmatprep.mubr.f32.mxu0 0.0
  %463 = vmatmul.mubr.f32.gmra.mrb[0].mxu0 %v321
  %v464 = vpop.f32.mrb[0].mxu0
  %v465 = vadd.f32 %v272, %v464
  %v466 = vpop.f32.mrb[0].mxu0
  %467 = vdwg.mxu0
  %v468 = vmax.f32 %v390, 0.0
  %v469 = vmax.f32 %v395, 0.0
  %v470 = vmax.f32 %v400, 0.0
  %v471 = vmax.f32 %v405, 0.0
  %v472 = vmax.f32 %v410, 0.0
  %v473 = vmax.f32 %v415, 0.0
  %v474 = vmax.f32 %v420, 0.0
  %v475 = vmax.f32 %v425, 0.0
  %v476 = vmax.f32 %v430, 0.0
  %v477 = vmax.f32 %v435, 0.0
  %v478 = vmax.f32 %v440, 0.0
  %v479 = vmax.f32 %v445, 0.0
  %v480 = vmax.f32 %v450, 0.0
  %v481 = vmax.f32 %v455, 0.0
  %v482 = vmax.f32 %v460, 0.0
  %v483 = vmax.f32 %v465, 0.0
  %v484 = vsel %vm238, %v468, -inf
  %vm485 = vcmask 521216
  %v486 = vsel %vm485, %v469, -inf
  %v487 = vmax.f32 %v484, %v486
  %v488 = vrot.slane %v487, 4
  %v489 = vmax.f32 %v487, %v488
  %v490 = vrot.slane %v489, 2
  %v491 = vmax.f32 %v489, %v490
  %v492 = vrot.slane %v491, 1
  %v493 = vmax.f32 %v491, %v492
  %v494 = vsel %vm238, %v470, -inf
  %v495 = vsel %vm485, %v471, -inf
  %v496 = vmax.f32 %v494, %v495
  %v497 = vrot.slane %v496, 4
  %v498 = vmax.f32 %v496, %v497
  %v499 = vrot.slane %v498, 2
  %v500 = vmax.f32 %v498, %v499
  %v501 = vrot.slane %v500, 1
  %v502 = vmax.f32 %v500, %v501
  %v503 = vsel %vm238, %v472, -inf
  %v504 = vsel %vm485, %v473, -inf
  %v505 = vmax.f32 %v503, %v504
  %v506 = vrot.slane %v505, 4
  %v507 = vmax.f32 %v505, %v506
  %v508 = vrot.slane %v507, 2
  %v509 = vmax.f32 %v507, %v508
  %v510 = vrot.slane %v509, 1
  %v511 = vmax.f32 %v509, %v510
  %v512 = vsel %vm238, %v474, -inf
  %v513 = vsel %vm485, %v475, -inf
  %v514 = vmax.f32 %v512, %v513
  %v515 = vrot.slane %v514, 4
  %v516 = vmax.f32 %v514, %v515
  %v517 = vrot.slane %v516, 2
  %v518 = vmax.f32 %v516, %v517
  %v519 = vrot.slane %v518, 1
  %v520 = vmax.f32 %v518, %v519
  %v521 = vsel %vm238, %v476, -inf
  %v522 = vsel %vm485, %v477, -inf
  %v523 = vmax.f32 %v521, %v522
  %v524 = vrot.slane %v523, 4
  %v525 = vmax.f32 %v523, %v524
  %v526 = vrot.slane %v525, 2
  %v527 = vmax.f32 %v525, %v526
  %v528 = vrot.slane %v527, 1
  %v529 = vmax.f32 %v527, %v528
  %v530 = vsel %vm238, %v478, -inf
  %v531 = vsel %vm485, %v479, -inf
  %v532 = vmax.f32 %v530, %v531
  %v533 = vrot.slane %v532, 4
  %v534 = vmax.f32 %v532, %v533
  %v535 = vrot.slane %v534, 2
  %v536 = vmax.f32 %v534, %v535
  %v537 = vrot.slane %v536, 1
  %v538 = vmax.f32 %v536, %v537
  %v539 = vsel %vm238, %v480, -inf
  %v540 = vsel %vm485, %v481, -inf
  %v541 = vmax.f32 %v539, %v540
  %v542 = vrot.slane %v541, 4
  %v543 = vmax.f32 %v541, %v542
  %v544 = vrot.slane %v543, 2
  %v545 = vmax.f32 %v543, %v544
  %v546 = vrot.slane %v545, 1
  %v547 = vmax.f32 %v545, %v546
  %v548 = vsel %vm238, %v482, -inf
  %v549 = vsel %vm485, %v483, -inf
  %v550 = vmax.f32 %v548, %v549
  %v551 = vrot.slane %v550, 4
  %v552 = vmax.f32 %v550, %v551
  %v553 = vrot.slane %v552, 2
  %v554 = vmax.f32 %v552, %v553
  %v555 = vrot.slane %v554, 1
  %v556 = vmax.f32 %v554, %v555
  %v557 = vld [vmem:[%s3] sm:$0xff]
  %559 = vset.pattern.permute.xlu0 0
  %560 = vperm.xlu0 %559, %v557
  %v561 = vpop.permute.xlu0 %560
  %v562 = vrot.slane %v561, 1
  %v563 = vrot.slane %v561, 2
  %v564 = vrot.slane %v561, 3
  %v565 = vrot.slane %v561, 4
  %v566 = vrot.slane %v561, 5
  %v567 = vrot.slane %v561, 6
  %v568 = vrot.slane %v561, 7
  %v577 = vmul.f32 %v493, %v561
  %v578 = vmul.f32 %v502, %v562
  %v579 = vmul.f32 %v511, %v563
  %v580 = vmul.f32 %v520, %v564
  %v581 = vmul.f32 %v529, %v565
  %v582 = vmul.f32 %v538, %v566
  %v583 = vmul.f32 %v547, %v567
  %v584 = vmul.f32 %v556, %v568
  %v593 = vrot.slane %v578, 7
  %vm594 = vcmask 1041409
  %v595 = vsel %vm594, %v593, %v577
  %v596 = vrot.slane %v579, 6
  %vm597 = vcmask 1042434
  %v598 = vsel %vm597, %v596, %v595
  %v599 = vrot.slane %v580, 5
  %vm600 = vcmask 1043459
  %v601 = vsel %vm600, %v599, %v598
  %v602 = vrot.slane %v582, 7
  %v603 = vsel %vm594, %v602, %v581
  %v604 = vrot.slane %v583, 6
  %v605 = vsel %vm597, %v604, %v603
  %v606 = vrot.slane %v584, 5
  %v607 = vsel %vm600, %v606, %v605
  %vm610 = vcmask 519168
  %v611 = vsel %vm610, %v601, 0.0
  %v612 = vrot.slane %v611, 4
  %v613 = vadd.f32 %v611, %v612
  %v614 = vrot.slane %v613, 2
  %v615 = vadd.f32 %v613, %v614
  %v616 = vrot.slane %v615, 1
  %v617 = vadd.f32 %v615, %v616
  %v618 = vsel %vm610, %v607, 0.0
  %v619 = vrot.slane %v618, 4
  %v620 = vadd.f32 %v618, %v619
  %v621 = vrot.slane %v620, 2
  %v622 = vadd.f32 %v620, %v621
  %v623 = vrot.slane %v622, 1
  %v624 = vadd.f32 %v622, %v623
  %v625 = vld [vmem:[%s4] sm:$0xff]
  %v626 = vld [vmem:[%s4 + $0x8] sm:$0xff]
  %v627 = vld [vmem:[%s4 + $0x10] sm:$0xff]
  %v628 = vld [vmem:[%s4 + $0x18] sm:$0xff]
  %v629 = vld [vmem:[%s4 + $0x20] sm:$0xff]
  %v630 = vld [vmem:[%s4 + $0x28] sm:$0xff]
  %v631 = vld [vmem:[%s4 + $0x30] sm:$0xff]
  %v632 = vld [vmem:[%s4 + $0x38] sm:$0xff]
  %v633 = vld [vmem:[%s5] sm:$0x1]
  %v635 = vlaneseq
  %v636 = vshrl.u32 %v635, 7
  %v637 = vsub.s32 0, %v636
  %v638 = vrot.slane %v633, %v637
  %v642 = vrot.slane %v624, 7
  %v643 = vsel %vm594, %v642, %v617
  %v644 = vsel %vm238, %v643, 0
  %646 = vmatprep.subr.mxu0 0.0
  %647 = vmatpush1.msra.mxu0 %v625
  %648 = vmatprep.subr.mxu0 0.0
  %649 = vmatpush1.msra.mxu0 %v626
  %650 = vmatprep.subr.mxu0 0.0
  %651 = vmatpush1.msra.mxu0 %v627
  %652 = vmatprep.subr.mxu0 0.0
  %653 = vmatpush1.msra.mxu0 %v628
  %654 = vmatprep.subr.mxu0 0.0
  %655 = vmatpush1.msra.mxu0 %v629
  %656 = vmatprep.subr.mxu0 0.0
  %657 = vmatpush1.msra.mxu0 %v630
  %658 = vmatprep.subr.mxu0 0.0
  %659 = vmatpush1.msra.mxu0 %v631
  %660 = vmatprep.subr.mxu0 0.0
  %661 = vmatpush1.msra.mxu0 %v632
  %662 = vmatprep.subr.mxu0 0.0
  %663 = vmatpush1.msra.mxu0 0.0
  %664 = vmatprep.subr.mxu0 0.0
  %665 = vmatpush1.msra.mxu0 0.0
  %666 = vmatprep.subr.mxu0 0.0
  %667 = vmatpush1.msra.mxu0 0.0
  %668 = vmatprep.subr.mxu0 0.0
  %669 = vmatpush1.msra.mxu0 0.0
  %670 = vmatprep.subr.mxu0 0.0
  %671 = vmatpush1.msra.mxu0 0.0
  %672 = vmatprep.subr.mxu0 0.0
  %673 = vmatpush1.msra.mxu0 0.0
  %674 = vmatprep.subr.mxu0 0.0
  %675 = vmatpush1.msra.mxu0 0.0
  %676 = vmatprep.subr.mxu0 0.0
  %677 = vmatpush1.msra.mxu0 0.0
  %678 = vmatprep.subr.mxu0 0.0
  %679 = vmatpush1.msra.mxu0 0.0
  %680 = vmatprep.subr.mxu0 0.0
  %681 = vmatpush1.msra.mxu0 0.0
  %682 = vmatprep.subr.mxu0 0.0
  %683 = vmatpush1.msra.mxu0 0.0
  %684 = vmatprep.subr.mxu0 0.0
  %685 = vmatpush1.msra.mxu0 0.0
  %686 = vmatprep.subr.mxu0 0.0
  %687 = vmatpush1.msra.mxu0 0.0
  %688 = vmatprep.subr.mxu0 0.0
  %689 = vmatpush1.msra.mxu0 0.0
  %690 = vmatprep.subr.mxu0 0.0
  %691 = vmatpush1.msra.mxu0 0.0
  %692 = vmatprep.subr.mxu0 0.0
  %693 = vmatpush1.msra.mxu0 0.0
  %694 = vmatprep.subr.mxu0 0.0
  %695 = vmatpush1.msra.mxu0 0.0
  %696 = vmatprep.subr.mxu0 0.0
  %697 = vmatpush1.msra.mxu0 0.0
  %698 = vmatprep.subr.mxu0 0.0
  %699 = vmatpush1.msra.mxu0 0.0
  %700 = vmatprep.subr.mxu0 0.0
  %701 = vmatpush1.msra.mxu0 0.0
  %702 = vmatprep.subr.mxu0 0.0
  %703 = vmatpush1.msra.mxu0 0.0
  %704 = vmatprep.subr.mxu0 0.0
  %705 = vmatpush1.msra.mxu0 0.0
  %706 = vmatprep.subr.mxu0 0.0
  %707 = vmatpush1.msra.mxu0 0.0
  %708 = vmatprep.subr.mxu0 0.0
  %709 = vmatpush1.msra.mxu0 0.0
  %710 = vmatprep.mubr.f32.mxu0 0.0
  %711 = vmatmul.mubr.f32.gmra.mrb[0].mxu0 %v644
  %v712 = vpop.f32.mrb[0].mxu0
  %v713 = vadd.f32 %v638, %v712
  %v714 = vpop.f32.mrb[0].mxu0
  %715 = vdwg.mxu0
  %v716 = vmax.f32 %v713, 0.0
  %vm717 = vcmask 254976
  %718 = vst.msk [vmem:[%s6] sm:$0x3] %vm717, %v716
  // Predicated region
  $region26: #{net_forward.1} parent=0 // pred_check
    _
  $region27: #{net_forward.1} parent=0 // pred_check_branch
    %720 = sbr.rel (0) target = $region29
  $region28: #{net_forward.1} parent=0 // pred_region
    _
  $region29: #{net_forward.1} parent=0 // pred_fallthru
    _
  // Predicated region
  $region30: #{net_forward.1} parent=0 // pred_check
    _
  $region31: #{net_forward.1} parent=0 // pred_check_branch
    %722 = sbr.rel (0) target = $region33
  $region32: #{net_forward.1} parent=0 // pred_region
    _
  $region33: #{net_forward.1} parent=0 // pred_fallthru
    _

</llo_original>
